<compile_context>
chip_gen: v6e
topology: v6e:2x2x1
jax: 0.10.0
libtpu: 0.0.40
codegen_flags: <defaults>
</compile_context>

<pallas_src>
import functools
import math

import numpy as np
import jax
import jax.numpy as jnp
from jax import lax
from jax.experimental import pallas as pl
from jax.experimental.pallas import tpu as pltpu


# ---------------------------------------------------------------------------
# small helpers (uint8 <-> f32 via int32 for safe Mosaic lowering)
# ---------------------------------------------------------------------------

def _u8_to_f32(x):
    return x.astype(jnp.int32).astype(jnp.float32)


def _f32_to_u8(x):
    # clamp(0,255) then truncate toward zero == floor for non-negative values,
    # matching torchvision's .clamp(0, 255).to(torch.uint8).
    return jnp.clip(x, 0.0, 255.0).astype(jnp.int32).astype(jnp.uint8)


def _lane_block(n, candidates):
    for cand in candidates:
        if n % cand == 0:
            return cand
    return n


# ---------------------------------------------------------------------------
# Pallas kernels
# ---------------------------------------------------------------------------

def _warp_nearest_kernel(mat_ref, img_ref, out_ref, *, C, H, W):
    """Affine inverse-warp, nearest interpolation, zero fill.

    mat_ref: SMEM (6,) f32 inverse affine matrix (output -> input, centred pixel coords).
    img_ref: VMEM (C*H, W) uint8 (channel-stacked full image, constant block).
    out_ref: VMEM (C, P) uint8 lane-dense block of flattened output pixels.

    One bf16 one-hot column gather for ALL channels runs on the MXU; the per-channel
    row select runs on the VPU + sublane reduce.
    """
    P = out_ref.shape[1]
    base = (pl.program_id(0) * P).astype(jnp.float32)

    m00 = mat_ref[0]; m01 = mat_ref[1]; m02 = mat_ref[2]
    m10 = mat_ref[3]; m11 = mat_ref[4]; m12 = mat_ref[5]

    # flattened output pixel index -> (y, x); +0.5 margin makes the floor-division exact.
    p = lax.broadcasted_iota(jnp.float32, (1, P), 1) + base
    y = jnp.floor((p + 0.5) / W)
    x = p - y * W

    cx = (W - 1) * 0.5
    cy = (H - 1) * 0.5
    bx = x - cx
    by = y - cy
    src_x = m00 * bx + m01 * by + m02 + cx
    src_y = m10 * bx + m11 * by + m12 + cy
    # TODO(synk): grid_sample's nearest tie-rounding is assumed half-to-even (jnp.round).
    sxi = jnp.round(src_x)
    syi = jnp.round(src_y)
    valid = (sxi >= 0.0) & (sxi <= W - 1.0) & (syi >= 0.0) & (syi <= H - 1.0)

    w_iota = lax.broadcasted_iota(jnp.float32, (W, P), 0)
    colsel = jnp.where(w_iota == sxi, 1.0, 0.0).astype(jnp.bfloat16)      # (W, P)
    h_iota = lax.broadcasted_iota(jnp.float32, (H, P), 0)
    rowmask = jnp.where((h_iota == syi) & valid, 1.0, 0.0)                # (H, P) f32

    # Single MXU column gather for all channels (values <= 255 are bf16-exact).
    img_bf = _u8_to_f32(img_ref[...]).astype(jnp.bfloat16)                # (C*H, W)
    cols = jnp.dot(img_bf, colsel, preferred_element_type=jnp.float32)    # (C*H, P)

    for c in range(C):
        vals = jnp.sum(cols[c * H:(c + 1) * H, :] * rowmask,
                       axis=0, keepdims=True)                             # (1, P)
        out_ref[pl.ds(c, 1), :] = _f32_to_u8(vals)


def _brightness_kernel(ratio_ref, img_ref, out_ref):
    ratio = ratio_ref[0]
    out_ref[...] = _f32_to_u8(ratio * _u8_to_f32(img_ref[...]))


def _color_kernel(ratio_ref, img_ref, out_ref):
    ratio = ratio_ref[0]
    img = _u8_to_f32(img_ref[...])                                        # (C, n)
    gray = jnp.floor(0.2989 * img[0:1] + 0.587 * img[1:2] + 0.114 * img[2:3])
    out_ref[...] = _f32_to_u8(ratio * img + (1.0 - ratio) * gray)


def _contrast_kernel(ratio_ref, img_ref, out_ref):
    ratio = ratio_ref[0]
    img = _u8_to_f32(img_ref[...])
    gray = jnp.floor(0.2989 * img[0:1] + 0.587 * img[1:2] + 0.114 * img[2:3])
    mean = jnp.mean(gray)
    out_ref[...] = _f32_to_u8(ratio * img + (1.0 - ratio) * mean)


def _sharpness_kernel(ratio_ref, img_ref, out_ref):
    """adjust_sharpness: blend with a 3x3 smoothed interior (separable box + center)."""
    ratio = ratio_ref[0]
    C, H, W = img_ref.shape
    img = _u8_to_f32(img_ref[...])
    # separable 3x3 box sum (circular rolls; borders are masked out below)
    left = pltpu.roll(img, 1, axis=2)
    right = pltpu.roll(img, (W - 1) % W, axis=2)
    rowsum = left + img + right
    up = pltpu.roll(rowsum, 1, axis=1)
    down = pltpu.roll(rowsum, (H - 1) % H, axis=1)
    boxsum = up + rowsum + down
    blur = jnp.round((boxsum + 4.0 * img) / 13.0)                         # kernel [[1,1,1],[1,5,1],[1,1,1]]/13
    ys = lax.broadcasted_iota(jnp.int32, (H, W), 0)
    xs = lax.broadcasted_iota(jnp.int32, (H, W), 1)
    interior = (ys > 0) & (ys < H - 1) & (xs > 0) & (xs < W - 1)
    degenerate = jnp.where(interior[None, :, :], blur, img)
    out_ref[...] = _f32_to_u8(ratio * img + (1.0 - ratio) * degenerate)


def _posterize_kernel(shift_ref, img_ref, out_ref):
    shift = shift_ref[0]                                                  # 2**(8-bits)
    img = _u8_to_f32(img_ref[...])
    out_ref[...] = _f32_to_u8(jnp.floor(img / shift) * shift)


def _solarize_kernel(thr_ref, img_ref, out_ref):
    img = _u8_to_f32(img_ref[...])
    out_ref[...] = _f32_to_u8(jnp.where(img >= thr_ref[0], 255.0 - img, img))


def _autocontrast_kernel(img_ref, out_ref):
    img = _u8_to_f32(img_ref[...])                                        # (C, n)
    mn = jnp.min(img, axis=1, keepdims=True)
    mx = jnp.max(img, axis=1, keepdims=True)
    degenerate = mx == mn
    scale = jnp.where(degenerate, 1.0, 255.0 / jnp.maximum(mx - mn, 1.0))
    mn = jnp.where(degenerate, 0.0, mn)
    out_ref[...] = _f32_to_u8((img - mn) * scale)


def _equalize_kernel(img_ref, out_ref):
    """Per-channel histogram equalization (torchvision _scale_channel semantics).

    img_ref / out_ref: (C, n) uint8, lane-dense.  Histogram and LUT application are
    chunked over lane blocks so VMEM stays bounded for any image size.
    """
    C, n = img_ref.shape
    P = _lane_block(n, (2048, 1024, 512, 256, 128))
    n_chunks = n // P

    bins = lax.broadcasted_iota(jnp.float32, (256, 1), 0)
    ii = lax.broadcasted_iota(jnp.int32, (256, 256), 0)
    jj = lax.broadcasted_iota(jnp.int32, (256, 256), 1)
    lower_strict = (jj < ii).astype(jnp.float32)     # strictly-lower-tri; kept f32 (exact counts)

    for c in range(C):
        def hist_of_chunk(start, c=c):
            blk = _u8_to_f32(img_ref[pl.ds(c, 1), pl.ds(start, P)])       # (1, P)
            eq = jnp.where(bins == blk, 1.0, 0.0)                         # (256, P)
            return jnp.sum(eq, axis=1, keepdims=True)                     # (256, 1)

        if n_chunks <= 16:
            hist = hist_of_chunk(0)
            for i in range(1, n_chunks):
                hist = hist + hist_of_chunk(i * P)
        else:
            def body(i, h):
                return h + hist_of_chunk(pl.multiple_of(i * P, P))
            hist = lax.fori_loop(0, n_chunks, body, jnp.zeros((256, 1), jnp.float32))

        excl_cum = jnp.dot(lower_strict, hist, preferred_element_type=jnp.float32)  # (256, 1)
        maxv = jnp.max(jnp.where(hist > 0.0, bins, -1.0))
        count_max = jnp.sum(jnp.where(bins == maxv, hist, 0.0))
        step = jnp.floor((n - count_max) / 255.0)
        safe_step = jnp.maximum(step, 1.0)
        lut = jnp.floor((excl_cum + jnp.floor(step * 0.5)) / safe_step)
        lut = jnp.clip(lut, 0.0, 255.0)
        lut = jnp.where(step == 0.0, bins, lut)                           # identity LUT when flat

        def apply_chunk(start, c=c, lut=lut):
            blk = _u8_to_f32(img_ref[pl.ds(c, 1), pl.ds(start, P)])       # (1, P)
            eq = jnp.where(bins == blk, 1.0, 0.0)                         # (256, P)
            mapped = jnp.sum(eq * lut, axis=0, keepdims=True)             # (1, P)
            out_ref[pl.ds(c, 1), pl.ds(start, P)] = _f32_to_u8(mapped)

        if n_chunks <= 16:
            for i in range(n_chunks):
                apply_chunk(i * P)
        else:
            def body2(i, carry):
                apply_chunk(pl.multiple_of(i * P, P))
                return carry
            lax.fori_loop(0, n_chunks, body2, 0)


# ---------------------------------------------------------------------------
# pallas_call glue
# ---------------------------------------------------------------------------

def _ew_call(kernel, scalars, img_flat_u8):
    """Elementwise / whole-image kernels on lane-dense (C, H*W) uint8 data."""
    c, n = img_flat_u8.shape
    in_specs = ([pl.BlockSpec(memory_space=pltpu.MemorySpace.SMEM)] * len(scalars)
                + [pl.BlockSpec(memory_space=pltpu.MemorySpace.VMEM)])
    fn = pl.pallas_call(
        kernel,
        out_shape=jax.ShapeDtypeStruct((c, n), jnp.uint8),
        in_specs=in_specs,
        out_specs=pl.BlockSpec(memory_space=pltpu.MemorySpace.VMEM),
    )
    return fn(*scalars, img_flat_u8)


def _sharpness_call(ratio, img_chw_u8):
    c, h, w = img_chw_u8.shape
    fn = pl.pallas_call(
        _sharpness_kernel,
        out_shape=jax.ShapeDtypeStruct((c, h, w), jnp.uint8),
        in_specs=[pl.BlockSpec(memory_space=pltpu.MemorySpace.SMEM),
                  pl.BlockSpec(memory_space=pltpu.MemorySpace.VMEM)],
        out_specs=pl.BlockSpec(memory_space=pltpu.MemorySpace.VMEM),
    )
    return fn(ratio, img_chw_u8)


def _warp_call(mat, img_chw_u8):
    c, h, w = img_chw_u8.shape
    n = h * w
    p = _lane_block(n, (1024, 512, 256, 128))
    img_stacked = img_chw_u8.reshape(c * h, w)   # channel-stacked slab (host-side reshape is free)
    fn = pl.pallas_call(
        functools.partial(_warp_nearest_kernel, C=c, H=h, W=w),
        out_shape=jax.ShapeDtypeStruct((c, n), jnp.uint8),
        grid=(n // p,),
        in_specs=[pl.BlockSpec(memory_space=pltpu.MemorySpace.SMEM),
                  pl.BlockSpec((c * h, w), lambda j: (0, 0))],
        out_specs=pl.BlockSpec((c, p), lambda j: (0, j)),
        compiler_params=pltpu.CompilerParams(dimension_semantics=("parallel",)),
    )
    return fn(mat, img_stacked)


# ---------------------------------------------------------------------------
# RandAugment forward (host-side control flow mirrors the PyTorch module)
# ---------------------------------------------------------------------------

_GEOMETRIC = ('ShearX', 'ShearY', 'TranslateX', 'TranslateY', 'Rotate')


def _inverse_affine_matrix(angle, translate, scale, shear):
    # torchvision.transforms.functional._get_inverse_affine_matrix with center=(0,0)
    rot = math.radians(angle)
    sx = math.radians(shear[0])
    sy = math.radians(shear[1])
    tx, ty = float(translate[0]), float(translate[1])
    a = math.cos(rot - sy) / math.cos(sy)
    b = -math.cos(rot - sy) * math.tan(sx) / math.cos(sy) - math.sin(rot)
    c = math.sin(rot - sy) / math.cos(sy)
    d = -math.sin(rot - sy) * math.tan(sx) / math.cos(sy) + math.cos(rot)
    m = [d, -b, 0.0, -c, a, 0.0]
    m = [x / scale for x in m]
    m[2] += m[0] * (-tx) + m[1] * (-ty)
    m[5] += m[3] * (-tx) + m[4] * (-ty)
    return m


def _apply_op(img_flat_u8, op_name, magnitude, hw):
    H, W = hw
    C, n = img_flat_u8.shape
    if op_name == 'Identity':
        return img_flat_u8
    if op_name in _GEOMETRIC:
        if op_name == 'ShearX':
            m = _inverse_affine_matrix(0.0, [0, 0], 1.0, [math.degrees(magnitude), 0.0])
        elif op_name == 'ShearY':
            m = _inverse_affine_matrix(0.0, [0, 0], 1.0, [0.0, math.degrees(magnitude)])
        elif op_name == 'TranslateX':
            m = _inverse_affine_matrix(0.0, [int(magnitude), 0], 1.0, [0.0, 0.0])
        elif op_name == 'TranslateY':
            m = _inverse_affine_matrix(0.0, [0, int(magnitude)], 1.0, [0.0, 0.0])
        else:  # Rotate (torchvision negates the angle internally)
            m = _inverse_affine_matrix(-magnitude, [0, 0], 1.0, [0.0, 0.0])
        return _warp_call(jnp.asarray(m, dtype=jnp.float32), img_flat_u8.reshape(C, H, W))
    if op_name == 'Brightness':
        return _ew_call(_brightness_kernel, [jnp.asarray([1.0 + magnitude], jnp.float32)], img_flat_u8)
    if op_name == 'Color':
        return _ew_call(_color_kernel, [jnp.asarray([1.0 + magnitude], jnp.float32)], img_flat_u8)
    if op_name == 'Contrast':
        return _ew_call(_contrast_kernel, [jnp.asarray([1.0 + magnitude], jnp.float32)], img_flat_u8)
    if op_name == 'Sharpness':
        out = _sharpness_call(jnp.asarray([1.0 + magnitude], jnp.float32), img_flat_u8.reshape(C, H, W))
        return out.reshape(C, n)
    if op_name == 'Posterize':
        shift = float(2 ** (8 - int(magnitude)))
        return _ew_call(_posterize_kernel, [jnp.asarray([shift], jnp.float32)], img_flat_u8)
    if op_name == 'Solarize':
        return _ew_call(_solarize_kernel, [jnp.asarray([magnitude], jnp.float32)], img_flat_u8)
    if op_name == 'AutoContrast':
        return _ew_call(_autocontrast_kernel, [], img_flat_u8)
    if op_name == 'Equalize':
        return _ew_call(_equalize_kernel, [], img_flat_u8)
    raise ValueError(f'The provided operator {op_name} is not recognized.')


class RandAugment:
    def __init__(self, num_ops=2, magnitude=9, num_magnitude_bins=31, fill=None):
        self.num_ops = num_ops
        self.magnitude = magnitude
        self.num_magnitude_bins = num_magnitude_bins
        # TODO(synk): only fill=None (zero fill) and NEAREST interpolation are implemented.
        self.fill = fill

    def _augmentation_space(self, num_bins, image_size):
        # image_size = (W, H), matching torchvision's _get_image_size ordering.
        return {
            'Identity': (np.array(0.0), False),
            'ShearX': (np.linspace(0.0, 0.3, num_bins), True),
            'ShearY': (np.linspace(0.0, 0.3, num_bins), True),
            'TranslateX': (np.linspace(0.0, 150.0 / 331.0 * image_size[0], num_bins), True),
            'TranslateY': (np.linspace(0.0, 150.0 / 331.0 * image_size[1], num_bins), True),
            'Rotate': (np.linspace(0.0, 30.0, num_bins), True),
            'Brightness': (np.linspace(0.0, 0.9, num_bins), True),
            'Color': (np.linspace(0.0, 0.9, num_bins), True),
            'Contrast': (np.linspace(0.0, 0.9, num_bins), True),
            'Sharpness': (np.linspace(0.0, 0.9, num_bins), True),
            'Posterize': (8 - np.round(np.arange(num_bins) / ((num_bins - 1) / 4)).astype(np.int32),
                          False),
            'Solarize': (np.linspace(255.0, 0.0, num_bins), False),
            'AutoContrast': (np.array(0.0), False),
            'Equalize': (np.array(0.0), False),
        }

    def __call__(self, img, key):
        # img: uint8 (C, H, W)
        C, H, W = img.shape
        n = H * W
        op_meta = self._augmentation_space(self.num_magnitude_bins, (W, H))
        names = list(op_meta.keys())
        # Draw all op choices / signs up front: a single host sync instead of one per op.
        k_op, k_sign = jax.random.split(key)
        op_indices = np.asarray(jax.random.randint(k_op, (self.num_ops,), 0, len(names)))
        signs = np.asarray(jax.random.randint(k_sign, (self.num_ops,), 0, 2))

        img_flat = img.reshape(C, n)          # lane-dense uint8 layout kept end-to-end
        for i in range(self.num_ops):
            op_name = names[int(op_indices[i])]
            magnitudes, signed = op_meta[op_name]
            magnitude = float(magnitudes[self.magnitude]) if magnitudes.ndim > 0 else 0.0
            if signed and int(signs[i]):
                magnitude *= -1.0
            img_flat = _apply_op(img_flat, op_name, magnitude, (H, W))
        return img_flat.reshape(C, H, W)


if __name__ == "__main__":
    key = jax.random.PRNGKey(0)
    k_img, k_aug = jax.random.split(key)
    img = jax.random.randint(k_img, (3, 16, 16), 0, 256, dtype=jnp.int32).astype(jnp.uint8)
    aug = RandAugment(num_ops=2, magnitude=9, num_magnitude_bins=31)
    out = aug(img, k_aug)
    out = jax.block_until_ready(out)
    assert out.shape == img.shape and out.dtype == jnp.uint8
    print("KERNEL_OK")
</pallas_src>

<mosaic_0001>
module attributes {stable_mosaic.version = 11 : i64} {
  func.func @_sharpness_kernel(%arg0: memref<1xf32, #tpu.memory_space<smem>>, %arg1: memref<3x16x16xi8, #tpu.memory_space<vmem>>, %arg2: memref<3x16x16xi8, #tpu.memory_space<vmem>>) attributes {dimension_semantics = [], scalar_prefetch = 0 : i64, scratch_operands = 0 : i64, tpu.core_type = #tpu.core_type<tc>} {
    %c0 = arith.constant 0 : index
    %0 = memref.load %arg0[%c0] : memref<1xf32, #tpu.memory_space<smem>>
    %c0_0 = arith.constant 0 : index
    %c0_1 = arith.constant 0 : index
    %c0_2 = arith.constant 0 : index
    %1 = vector.load %arg1[%c0_0, %c0_1, %c0_2] : memref<3x16x16xi8, #tpu.memory_space<vmem>>, vector<3x16x16xi8>
    %2 = arith.extui %1 : vector<3x16x16xi8> to vector<3x16x16xi32>
    %3 = arith.sitofp %2 : vector<3x16x16xi32> to vector<3x16x16xf32>
    %c1_i32 = arith.constant 1 : i32
    %4 = tpu.dynamic_rotate %3 by %c1_i32 dim 2 : vector<3x16x16xf32>, i32 -> vector<3x16x16xf32>
    %c15_i32 = arith.constant 15 : i32
    %5 = tpu.dynamic_rotate %3 by %c15_i32 dim 2 : vector<3x16x16xf32>, i32 -> vector<3x16x16xf32>
    %6 = arith.addf %4, %3 : vector<3x16x16xf32>
    %7 = arith.addf %6, %5 : vector<3x16x16xf32>
    %c1_i32_3 = arith.constant 1 : i32
    %8 = tpu.dynamic_rotate %7 by %c1_i32_3 dim 1 : vector<3x16x16xf32>, i32 -> vector<3x16x16xf32>
    %c15_i32_4 = arith.constant 15 : i32
    %9 = tpu.dynamic_rotate %7 by %c15_i32_4 dim 1 : vector<3x16x16xf32>, i32 -> vector<3x16x16xf32>
    %10 = arith.addf %8, %7 : vector<3x16x16xf32>
    %11 = arith.addf %10, %9 : vector<3x16x16xf32>
    %cst = arith.constant 4.000000e+00 : f32
    %12 = vector.broadcast %cst : f32 to vector<3x16x16xf32>
    %13 = arith.mulf %12, %3 : vector<3x16x16xf32>
    %14 = arith.addf %11, %13 : vector<3x16x16xf32>
    %cst_5 = arith.constant 1.300000e+01 : f32
    %15 = vector.broadcast %cst_5 : f32 to vector<3x16x16xf32>
    %16 = arith.divf %14, %15 : vector<3x16x16xf32>
    %17 = math.roundeven %16 : vector<3x16x16xf32>
    %18 = tpu.iota {dimensions = array<i32: 0>} : vector<16x16xi32>
    %19 = tpu.iota {dimensions = array<i32: 1>} : vector<16x16xi32>
    %c0_i32 = arith.constant 0 : i32
    %20 = vector.broadcast %c0_i32 : i32 to vector<16x16xi32>
    %21 = arith.cmpi sgt, %18, %20 : vector<16x16xi32>
    %c15_i32_6 = arith.constant 15 : i32
    %22 = vector.broadcast %c15_i32_6 : i32 to vector<16x16xi32>
    %23 = arith.cmpi slt, %18, %22 : vector<16x16xi32>
    %24 = arith.andi %21, %23 : vector<16x16xi1>
    %c0_i32_7 = arith.constant 0 : i32
    %25 = vector.broadcast %c0_i32_7 : i32 to vector<16x16xi32>
    %26 = arith.cmpi sgt, %19, %25 : vector<16x16xi32>
    %27 = arith.andi %24, %26 : vector<16x16xi1>
    %c15_i32_8 = arith.constant 15 : i32
    %28 = vector.broadcast %c15_i32_8 : i32 to vector<16x16xi32>
    %29 = arith.cmpi slt, %19, %28 : vector<16x16xi32>
    %30 = arith.andi %27, %29 : vector<16x16xi1>
    %31 = vector.shape_cast %30 : vector<16x16xi1> to vector<1x16x16xi1>
    %32 = vector.shape_cast %31 : vector<1x16x16xi1> to vector<1x16x16xi1>
    %33 = vector.broadcast %32 : vector<1x16x16xi1> to vector<3x16x16xi1>
    %34 = arith.select %33, %17, %3 : vector<3x16x16xi1>, vector<3x16x16xf32>
    %35 = vector.broadcast %0 : f32 to vector<3x16x16xf32>
    %36 = arith.mulf %35, %3 : vector<3x16x16xf32>
    %cst_9 = arith.constant 1.000000e+00 : f32
    %37 = arith.subf %cst_9, %0 : f32
    %38 = vector.broadcast %37 : f32 to vector<3x16x16xf32>
    %39 = arith.mulf %38, %34 : vector<3x16x16xf32>
    %40 = arith.addf %36, %39 : vector<3x16x16xf32>
    %cst_10 = arith.constant 0.000000e+00 : f32
    %cst_11 = arith.constant 2.550000e+02 : f32
    %41 = vector.broadcast %cst_10 : f32 to vector<3x16x16xf32>
    %42 = arith.maximumf %41, %40 : vector<3x16x16xf32>
    %43 = vector.broadcast %cst_11 : f32 to vector<3x16x16xf32>
    %44 = arith.minimumf %43, %42 : vector<3x16x16xf32>
    %45 = arith.fptosi %44 : vector<3x16x16xf32> to vector<3x16x16xi32>
    %46 = arith.trunci %45 : vector<3x16x16xi32> to vector<3x16x16xi8>
    %c0_12 = arith.constant 0 : index
    %c0_13 = arith.constant 0 : index
    %c0_14 = arith.constant 0 : index
    %47 = vector.load %arg2[%c0_12, %c0_13, %c0_14] : memref<3x16x16xi8, #tpu.memory_space<vmem>>, vector<3x16x16xi8>
    tpu.vector_store %arg2[%c0_12, %c0_13, %c0_14], %46 {strides = array<i32>} : memref<3x16x16xi8, #tpu.memory_space<vmem>>, vector<3x16x16xi8>,
    return
  }
}

</mosaic_0001>

<llo_original>
// kernel: tpu_custom_call.1
$region0: #{tpu_custom_call.1}
  #allocation0 [shape = 'u32[]', space=smem, size = 0x4, offset = 0x4, fixed_abs, tag = 'smem constant byte address 0x4 - core index']
  #allocation1 [shape = 'u32[144,128]{1,0:T(1,128)}', space=vmem, size = 0x12000, scoped, tag = 'internal scratch']
  #allocation2 [shape = 'f32[1]{0:T(128)S(6)}', space=smem, size = 0x200, scoped, tag = 'scoped memory for tpu_custom_call.1']
  %s0 = inlined_call_operand.<no memory space> [shape: f32[1], index: 0, kind: input, shape index: {}]
  %s1 = inlined_call_operand.hbm [shape: u8[3,16,16], index: 1, kind: input, shape index: {}]
  %s2 = inlined_call_operand.hbm [shape: u8[3,16,16], index: 2, kind: output, shape index: {}]
  %s3 = sld [smem:[#allocation0]]
  $region22: #{tpu_custom_call.1} parent=0
    _
  %s5 = ssub.s32 1, %s3
  %s6 = scalar_select 0, %s5, %s3
  %7 = sst [smem:[#allocation2]] %s0
  $region1: #{tpu_custom_call.1} parent=0
    #allocation3 [shape = 'u8[6144]{0}', space=vmem, size = 0x1800, scoped, tag = 'input window, operand 1, single buffered']
    #allocation4 [shape = 's32[1]{0}', space=sflag, size = 0x4, scoped, tag = 'scoped memory for tpu_custom_call.1']
    #allocation5 [shape = 's32[1]{0}', space=sflag, size = 0x4, scoped, tag = 'scoped memory for tpu_custom_call.1']
    #allocation6 [shape = 'u8[6144]{0}', space=vmem, size = 0x1800, scoped, tag = 'output window, operand 0, single buffered']
    %8 = vsyncpa [#allocation4], 0
    %9 = vsyncpa [#allocation5], 0
    // Predicated region
    $region2: #{tpu_custom_call.1} parent=1 // pred_check
      _
    $region3: #{tpu_custom_call.1} parent=1 // pred_check_branch
      %11 = sbr.rel (0) target = $region5
    $region4: #{tpu_custom_call.1} parent=1 // pred_region
      _
    $region5: #{tpu_custom_call.1} parent=1 // pred_fallthru
      _
    // Predicated region
    $region6: #{tpu_custom_call.1} parent=1 // pred_check
      _
    $region7: #{tpu_custom_call.1} parent=1 // pred_check_branch
      %13 = sbr.rel (0) target = $region9
    $region8: #{tpu_custom_call.1} parent=1 // pred_region
      %s15 = ssub.s32 192, 192
      %16 = vsyncadd [#allocation4], %s15
      %s17 = sshll.u32 [#allocation3], 4
      %s18 = int_to_ptr.vmem [resolvable:$true] %s17
      %23 = dma.hbm_to_vmem [thread:$0]  %s1, 192, %s18, [#allocation4], 32, 32, 2
    $region9: #{tpu_custom_call.1} parent=1 // pred_fallthru
      _
    // Predicated region
    $region10: #{tpu_custom_call.1} parent=1 // pred_check
      _
    $region11: #{tpu_custom_call.1} parent=1 // pred_check_branch
      %25 = sbr.rel (0) target = $region13
    $region12: #{tpu_custom_call.1} parent=1 // pred_region
      %26 = dma.done [#allocation4], 192
    $region13: #{tpu_custom_call.1} parent=1 // pred_fallthru
      _
    %s27 = sld [smem:[#allocation2]]
    %v28 = vld [vmem:[#allocation3] sm:$0x3]
    %v29 = vld [vmem:[#allocation3 + $0x2] sm:$0x3]
    %v30 = vld [vmem:[#allocation3 + $0x4] sm:$0x3]
    %v31 = vld [vmem:[#allocation3 + $0x6] sm:$0x3]
    %v32 = vld [vmem:[#allocation3 + $0x8] sm:$0x3]
    %v33 = vld [vmem:[#allocation3 + $0xa] sm:$0x3]
    %v34 = vunpack.c.0.s8 %v28
    %v35 = vunpack.c.0.s8 %v29
    %v36 = vunpack.c.0.s8 %v30
    %v37 = vunpack.c.0.s8 %v31
    %v38 = vunpack.c.0.s8 %v32
    %v39 = vunpack.c.0.s8 %v33
    %v40 = vand.u32 %v34, 255
    %v41 = vand.u32 %v35, 255
    %v42 = vand.u32 %v36, 255
    %v43 = vand.u32 %v37, 255
    %v44 = vand.u32 %v38, 255
    %v45 = vand.u32 %v39, 255
    %v46 = vcvt.s32.f32 %v40
    %v47 = vcvt.s32.f32 %v41
    %v48 = vcvt.s32.f32 %v42
    %v49 = vcvt.s32.f32 %v43
    %v50 = vcvt.s32.f32 %v44
    %v51 = vcvt.s32.f32 %v45
    %vm52 = vcmask 1047680
    %53 = vrot.lane.b32.xlu0 %v46, 16
    %v54 = vpop.permute.xlu0 %53
    %v55 = vsel %vm52, %v54, %v46
    %56 = vrot.lane.b32.xlu0 %v47, 16
    %v57 = vpop.permute.xlu0 %56
    %v58 = vsel %vm52, %v57, %v47
    %59 = vrot.lane.b32.xlu0 %v48, 16
    %v60 = vpop.permute.xlu0 %59
    %v61 = vsel %vm52, %v60, %v48
    %62 = vrot.lane.b32.xlu0 %v49, 16
    %v63 = vpop.permute.xlu0 %62
    %v64 = vsel %vm52, %v63, %v49
    %65 = vrot.lane.b32.xlu0 %v50, 16
    %v66 = vpop.permute.xlu0 %65
    %v67 = vsel %vm52, %v66, %v50
    %68 = vrot.lane.b32.xlu0 %v51, 16
    %v69 = vpop.permute.xlu0 %68
    %v70 = vsel %vm52, %v69, %v51
    %71 = vrot.lane.b32.xlu0 %v55, 16
    %v72 = vpop.permute.xlu0 %71
    %73 = vrot.lane.b32.xlu0 %v58, 16
    %v74 = vpop.permute.xlu0 %73
    %75 = vrot.lane.b32.xlu0 %v61, 16
    %v76 = vpop.permute.xlu0 %75
    %77 = vrot.lane.b32.xlu0 %v64, 16
    %v78 = vpop.permute.xlu0 %77
    %79 = vrot.lane.b32.xlu0 %v67, 16
    %v80 = vpop.permute.xlu0 %79
    %81 = vrot.lane.b32.xlu0 %v70, 16
    %v82 = vpop.permute.xlu0 %81
    %v83 = vsel %vm52, %v72, %v46
    %v84 = vsel %vm52, %v74, %v47
    %v85 = vsel %vm52, %v76, %v48
    %v86 = vsel %vm52, %v78, %v49
    %v87 = vsel %vm52, %v80, %v50
    %v88 = vsel %vm52, %v82, %v51
    %95 = vrot.lane.b32.xlu0 %v46, 15
    %v96 = vpop.permute.xlu0 %95
    %97 = vrot.lane.b32.xlu0 %v47, 15
    %v98 = vpop.permute.xlu0 %97
    %99 = vrot.lane.b32.xlu0 %v48, 15
    %v100 = vpop.permute.xlu0 %99
    %101 = vrot.lane.b32.xlu0 %v49, 15
    %v102 = vpop.permute.xlu0 %101
    %103 = vrot.lane.b32.xlu0 %v50, 15
    %v104 = vpop.permute.xlu0 %103
    %105 = vrot.lane.b32.xlu0 %v51, 15
    %v106 = vpop.permute.xlu0 %105
    %v113 = vadd.f32 %v83, %v96
    %v114 = vadd.f32 %v84, %v98
    %v115 = vadd.f32 %v85, %v100
    %v116 = vadd.f32 %v86, %v102
    %v117 = vadd.f32 %v87, %v104
    %v118 = vadd.f32 %v88, %v106
    %125 = vrot.lane.b32.xlu0 %v83, 14
    %v126 = vpop.permute.xlu0 %125
    %127 = vrot.lane.b32.xlu0 %v84, 14
    %v128 = vpop.permute.xlu0 %127
    %129 = vrot.lane.b32.xlu0 %v85, 14
    %v130 = vpop.permute.xlu0 %129
    %131 = vrot.lane.b32.xlu0 %v86, 14
    %v132 = vpop.permute.xlu0 %131
    %133 = vrot.lane.b32.xlu0 %v87, 14
    %v134 = vpop.permute.xlu0 %133
    %135 = vrot.lane.b32.xlu0 %v88, 14
    %v136 = vpop.permute.xlu0 %135
    %v143 = vadd.f32 %v113, %v126
    %v144 = vadd.f32 %v114, %v128
    %v145 = vadd.f32 %v115, %v130
    %v146 = vadd.f32 %v116, %v132
    %v147 = vadd.f32 %v117, %v134
    %v148 = vadd.f32 %v118, %v136
    %155 = vrot.lane.b32.xlu0 %v143, 113
    %v156 = vpop.permute.xlu0 %155
    %157 = vrot.lane.b32.xlu0 %v144, 113
    %v158 = vpop.permute.xlu0 %157
    %159 = vrot.lane.b32.xlu0 %v145, 113
    %v160 = vpop.permute.xlu0 %159
    %161 = vrot.lane.b32.xlu0 %v146, 113
    %v162 = vpop.permute.xlu0 %161
    %163 = vrot.lane.b32.xlu0 %v147, 113
    %v164 = vpop.permute.xlu0 %163
    %165 = vrot.lane.b32.xlu0 %v148, 113
    %v166 = vpop.permute.xlu0 %165
    %v173 = vrot.slane %v156, 7
    %v174 = vrot.slane %v160, 7
    %v175 = vrot.slane %v164, 7
    %v176 = vrot.slane %v158, 7
    %v177 = vrot.slane %v162, 7
    %v178 = vrot.slane %v166, 7
    %v179 = vlaneseq
    %v180 = vshrl.u32 %v179, 7
    %vm181 = vcmp.lt.s32.totalorder %v180, 1
    %v182 = vsel %vm181, %v173, %v176
    %v183 = vsel %vm181, %v174, %v177
    %v184 = vsel %vm181, %v175, %v178
    %v185 = vsel %vm181, %v176, %v173
    %v186 = vsel %vm181, %v177, %v174
    %v187 = vsel %vm181, %v178, %v175
    %v188 = vrot.slane %v156, 1
    %v189 = vrot.slane %v160, 1
    %v190 = vrot.slane %v164, 1
    %v191 = vrot.slane %v158, 1
    %v192 = vrot.slane %v162, 1
    %v193 = vrot.slane %v166, 1
    %vm194 = vcmp.lt.s32.totalorder %v180, 7
    %v195 = vsel %vm194, %v188, %v191
    %v196 = vsel %vm194, %v189, %v192
    %v197 = vsel %vm194, %v190, %v193
    %v198 = vsel %vm194, %v191, %v188
    %v199 = vsel %vm194, %v192, %v189
    %v200 = vsel %vm194, %v193, %v190
    %v201 = vadd.f32 %v185, %v156
    %v202 = vadd.f32 %v182, %v158
    %v203 = vadd.f32 %v186, %v160
    %v204 = vadd.f32 %v183, %v162
    %v205 = vadd.f32 %v187, %v164
    %v206 = vadd.f32 %v184, %v166
    %v207 = vadd.f32 %v201, %v195
    %v208 = vadd.f32 %v202, %v198
    %v209 = vadd.f32 %v203, %v196
    %v210 = vadd.f32 %v204, %v199
    %v211 = vadd.f32 %v205, %v197
    %v212 = vadd.f32 %v206, %v200
    %v213 = vmul.f32 %v46, 4.0
    %v214 = vmul.f32 %v47, 4.0
    %v215 = vmul.f32 %v48, 4.0
    %v216 = vmul.f32 %v49, 4.0
    %v217 = vmul.f32 %v50, 4.0
    %v218 = vmul.f32 %v51, 4.0
    %v219 = vadd.f32 %v207, %v213
    %v220 = vadd.f32 %v208, %v214
    %v221 = vadd.f32 %v209, %v215
    %v222 = vadd.f32 %v210, %v216
    %v223 = vadd.f32 %v211, %v217
    %v224 = vadd.f32 %v212, %v218
    %v225 = vrcp.pop 13.0
    %v226 = vmul.f32 %v219, %v225
    %v227 = vmul.f32 %v220, %v225
    %v228 = vmul.f32 %v221, %v225
    %v229 = vmul.f32 %v222, %v225
    %v230 = vmul.f32 %v223, %v225
    %v231 = vmul.f32 %v224, %v225
    %v232 = vround.ne.pseudo %v226
    %v233 = vround.ne.pseudo %v227
    %v234 = vround.ne.pseudo %v228
    %v235 = vround.ne.pseudo %v229
    %v236 = vround.ne.pseudo %v230
    %v237 = vround.ne.pseudo %v231
    %v238 = vadd.s32 %v180, 8
    %v239 = vlaneseq
    %v240 = vand.u32 %v239, 127
    %vm241 = vcmp.gt.s32.totalorder %v180, 0
    %vm242 = vcmp.gt.s32.totalorder %v238, 0
    %vm243 = vcmp.lt.s32.totalorder %v180, 15
    %vm244 = vcmp.lt.s32.totalorder %v238, 15
    %vm245 = vmand %vm241, %vm243
    %vm246 = vmand %vm242, %vm244
    %vm247 = vcmp.gt.s32.totalorder %v240, 0
    %vm248 = vmand %vm245, %vm247
    %vm249 = vmand %vm246, %vm247
    %vm250 = vcmp.lt.s32.totalorder %v240, 15
    %vm251 = vmand %vm248, %vm250
    %vm252 = vmand %vm249, %vm250
    %v253 = vsel %vm251, 1, 0
    %v254 = vsel %vm252, 1, 0
    %vm255 = vcmp.eq.s32.totalorder %v253, 1
    %vm256 = vcmp.eq.s32.totalorder %v254, 1
    %v257 = vsel %vm255, %v232, %v46
    %v258 = vsel %vm256, %v233, %v47
    %v259 = vsel %vm255, %v234, %v48
    %v260 = vsel %vm256, %v235, %v49
    %v261 = vsel %vm255, %v236, %v50
    %v262 = vsel %vm256, %v237, %v51
    %v263 = vstv %s27
    %v264 = vmul.f32 %v263, %v46
    %v265 = vmul.f32 %v263, %v47
    %v266 = vmul.f32 %v263, %v48
    %v267 = vmul.f32 %v263, %v49
    %v268 = vmul.f32 %v263, %v50
    %v269 = vmul.f32 %v263, %v51
    %s270 = ssub.f32 1.0, %s27
    %v271 = vstv %s270
    %v272 = vmul.f32 %v271, %v257
    %v273 = vmul.f32 %v271, %v258
    %v274 = vmul.f32 %v271, %v259
    %v275 = vmul.f32 %v271, %v260
    %v276 = vmul.f32 %v271, %v261
    %v277 = vmul.f32 %v271, %v262
    %v278 = vadd.f32 %v264, %v272
    %v279 = vadd.f32 %v265, %v273
    %v280 = vadd.f32 %v266, %v274
    %v281 = vadd.f32 %v267, %v275
    %v282 = vadd.f32 %v268, %v276
    %v283 = vadd.f32 %v269, %v277
    %v284 = vmax.f32 %v278, 0.0
    %v285 = vmax.f32 %v279, 0.0
    %v286 = vmax.f32 %v280, 0.0
    %v287 = vmax.f32 %v281, 0.0
    %v288 = vmax.f32 %v282, 0.0
    %v289 = vmax.f32 %v283, 0.0
    %v290 = vmin.f32 %v284, 255.0
    %v291 = vmin.f32 %v285, 255.0
    %v292 = vmin.f32 %v286, 255.0
    %v293 = vmin.f32 %v287, 255.0
    %v294 = vmin.f32 %v288, 255.0
    %v295 = vmin.f32 %v289, 255.0
    %v296 = vcvt.f32.s32.to.zero.pseudo %v290
    %v297 = vcvt.f32.s32.to.zero.pseudo %v291
    %v298 = vcvt.f32.s32.to.zero.pseudo %v292
    %v299 = vcvt.f32.s32.to.zero.pseudo %v293
    %v300 = vcvt.f32.s32.to.zero.pseudo %v294
    %v301 = vcvt.f32.s32.to.zero.pseudo %v295
    %v302 = vpack.c.b16 %v296, %v296
    %v303 = vpack.c.b8 %v302, %v302
    %v304 = vpack.c.b16 %v297, %v297
    %v305 = vpack.c.b8 %v304, %v304
    %v306 = vpack.c.b16 %v298, %v298
    %v307 = vpack.c.b8 %v306, %v306
    %v308 = vpack.c.b16 %v299, %v299
    %v309 = vpack.c.b8 %v308, %v308
    %v310 = vpack.c.b16 %v300, %v300
    %v311 = vpack.c.b8 %v310, %v310
    %v312 = vpack.c.b16 %v301, %v301
    %v313 = vpack.c.b8 %v312, %v312
    %vm314 = vcmask 123904
    %315 = vst.msk [vmem:[#allocation6] sm:$0x3] %vm314, %v303
    %316 = vst.msk [vmem:[#allocation6 + $0x2] sm:$0x3] %vm314, %v305
    %317 = vst.msk [vmem:[#allocation6 + $0x4] sm:$0x3] %vm314, %v307
    %318 = vst.msk [vmem:[#allocation6 + $0x6] sm:$0x3] %vm314, %v309
    %319 = vst.msk [vmem:[#allocation6 + $0x8] sm:$0x3] %vm314, %v311
    %320 = vst.msk [vmem:[#allocation6 + $0xa] sm:$0x3] %vm314, %v313
    // Predicated region
    $region14: #{tpu_custom_call.1} parent=1 // pred_check
      _
    $region15: #{tpu_custom_call.1} parent=1 // pred_check_branch
      %322 = sbr.rel (0) target = $region17
    $region16: #{tpu_custom_call.1} parent=1 // pred_region
      %s324 = ssub.s32 192, 192
      %325 = vsyncadd [#allocation5], %s324
      %s326 = sshll.u32 [#allocation6], 4
      %s327 = int_to_ptr.vmem [resolvable:$true] %s326
      %332 = dma.vmem_to_hbm [thread:$0]  %s327, 192, %s2, [#allocation5], 32, 32, 2
    $region17: #{tpu_custom_call.1} parent=1 // pred_fallthru
      _
    // Predicated region
    $region18: #{tpu_custom_call.1} parent=1 // pred_check
      _
    $region19: #{tpu_custom_call.1} parent=1 // pred_check_branch
      %334 = sbr.rel (0) target = $region21
    $region20: #{tpu_custom_call.1} parent=1 // pred_region
      %335 = dma.done [#allocation5], 192
    $region21: #{tpu_custom_call.1} parent=1 // pred_fallthru
      _
    %336 = vsyncpa [#allocation4], 1
    %337 = vsyncpa [#allocation5], 1

</llo_original>
